<compile_context>
chip_gen: v5e
topology: v5e:2x2
jax: 0.10.0
libtpu: 0.0.40
codegen_flags: <defaults>
</compile_context>

<pallas_src>
import jax
import jax.numpy as jnp
from jax.experimental import pallas as pl
from jax.experimental.pallas import tpu as pltpu

_MIB = 1024 * 1024


def _pool_h_kernel(x_ref, o_ref):
    # horizontal=True: mean over H (axis 1 of the (bc, H, W-tile) block),
    # broadcast back over H.  f32 accumulation is fused into the reduction;
    # compile-time reciprocal; cast on the small reduced tensor pre-broadcast.
    inv_h = 1.0 / x_ref.shape[1]
    s = jnp.sum(x_ref[...], axis=1, keepdims=True, dtype=jnp.float32) * inv_h
    o_ref[...] = jnp.broadcast_to(s.astype(o_ref.dtype), o_ref.shape)


def _pool_v_kernel(x_ref, o_ref):
    # horizontal=False: mean over W (axis 2 of the (bc, H-tile, W) block),
    # broadcast back over W.
    inv_w = 1.0 / x_ref.shape[2]
    s = jnp.sum(x_ref[...], axis=2, keepdims=True, dtype=jnp.float32) * inv_w
    o_ref[...] = jnp.broadcast_to(s.astype(o_ref.dtype), o_ref.shape)


def _tpu_vmem_and_cores():
    """Trace-time chip query: (physical VMEM bytes, TensorCores per chip).

    v7x exposes 64 MiB VMEM per TensorCore and has 2 TCs/chip; v5e/v6e expose
    128 MiB with a single TC.  Falls back to conservative single-core defaults
    if the query is unavailable.
    """
    vmem = 128 * _MIB
    try:
        info = pltpu.get_tpu_info()
        vmem = int(getattr(info, "vmem_capacity_bytes", vmem) or vmem)
    except Exception:
        pass
    cores = 2 if vmem <= 64 * _MIB else 1
    return vmem, cores


def _plan_blocks(nc, H, W, itemsize, horizontal, target_bytes, cores):
    """Pick (block_shape, grid, index_map, dimension_semantics)."""
    plane_bytes = H * W * itemsize

    if plane_bytes <= target_bytes:
        # Block over the fused N*C plane axis only.  Last two block dims are
        # the full (H, W), so the (8,128) rule holds for any bc; the last
        # block may be ragged on the plane axis (pl.cdiv grid).
        bc = max(1, min(nc, target_bytes // plane_bytes))
        if cores >= 2 and nc >= 2:
            # v7x megacore: round the step count up to an even multiple of the
            # core count so both TensorCores stream a balanced share of HBM.
            steps = -(-nc // bc)
            if steps < cores or steps % cores:
                steps = max(cores, -(-steps // cores) * cores)
                bc = -(-nc // steps)
        grid = (pl.cdiv(nc, bc),)
        return (bc, H, W), grid, (lambda i: (i, 0, 0)), ("parallel",)

    if horizontal:
        # Reduce over H (kept full); tile the broadcast axis W in multiples of
        # 128 lanes.  Ragged last W block is fine (reduction never crosses W).
        tw = max(128, (target_bytes // max(1, H * itemsize)) // 128 * 128)
        if tw >= W:
            tw = W
        grid = (nc, pl.cdiv(W, tw))
        return (1, H, tw), grid, (lambda i, j: (i, 0, j)), ("parallel", "parallel")
    else:
        # Reduce over W (kept full); tile the broadcast axis H in multiples of
        # the sublane pack (8 for f32, 16 for bf16, 32 for 1-byte dtypes).
        sub = 8 * max(1, 4 // itemsize)
        th = max(sub, (target_bytes // max(1, W * itemsize)) // sub * sub)
        if th >= H:
            th = H
        grid = (nc, pl.cdiv(H, th))
        return (1, th, W), grid, (lambda i, j: (i, j, 0)), ("parallel", "parallel")


def projection_pooling(x, horizontal=True, *, donate=False, block_bytes=None):
    """x: (N, C, H, W) -> (N, C, H, W), matching PyTorch ProjectionPooling.

    horizontal=True  -> mean over H, broadcast back over H.
    horizontal=False -> mean over W, broadcast back over W.
    donate=True      -> alias the input HBM buffer as the output
                        (input_output_aliases={0: 0}); only use if the caller
                        can give up x.
    block_bytes      -> optional override of the per-buffer block budget.
    """
    N, C, H, W = x.shape
    nc = N * C
    xf = x.reshape(nc, H, W)
    itemsize = jnp.dtype(x.dtype).itemsize

    vmem_cap, cores = _tpu_vmem_and_cores()
    if block_bytes is None:
        # ~4 MiB/buffer on v7x (64 MiB VMEM), ~8 MiB/buffer on v5e/v6e.
        block_bytes = 4 * _MIB if cores >= 2 else 8 * _MIB
    vmem_limit = int(max(32 * _MIB, min(64 * _MIB, vmem_cap // 2)))

    block, grid, index_map, dims = _plan_blocks(
        nc, H, W, itemsize, horizontal, block_bytes, cores)
    kernel = _pool_h_kernel if horizontal else _pool_v_kernel

    cost = pl.CostEstimate(
        flops=nc * H * W,                          # ~1 add per element
        transcendentals=0,
        bytes_accessed=2 * nc * H * W * itemsize,  # read + write (mem-bound)
    )

    out = pl.pallas_call(
        kernel,
        out_shape=jax.ShapeDtypeStruct((nc, H, W), x.dtype),
        grid_spec=pltpu.PrefetchScalarGridSpec(
            num_scalar_prefetch=0,
            grid=grid,
            in_specs=[pl.BlockSpec(block, index_map)],
            out_specs=pl.BlockSpec(block, index_map),
        ),
        compiler_params=pltpu.CompilerParams(
            dimension_semantics=dims,
            vmem_limit_bytes=vmem_limit,
        ),
        cost_estimate=cost,
        input_output_aliases=({0: 0} if donate else {}),
    )(xf)
    return out.reshape(N, C, H, W)


if __name__ == "__main__":
    key = jax.random.PRNGKey(0)

    def ref(x, horizontal):
        axis = -2 if horizontal else -1
        return jnp.broadcast_to(jnp.mean(x, axis=axis, keepdims=True), x.shape)

    # Base shape from the module spec: (N, C, H, W) = (2, 4, 16, 16).
    x = jax.random.normal(key, (2, 4, 16, 16), dtype=jnp.float32)
    for horiz in (True, False):
        out = jax.block_until_ready(projection_pooling(x, horizontal=horiz))
        assert out.shape == x.shape and out.dtype == x.dtype
        assert jnp.allclose(out, ref(x, horiz), atol=1e-5, rtol=1e-5)

    # Donated-input path (input_output_aliases={0: 0}).
    out_d = jax.block_until_ready(projection_pooling(x, horizontal=True, donate=True))
    assert jnp.allclose(out_d, ref(x, True), atol=1e-5, rtol=1e-5)

    k1, k2, k3 = jax.random.split(key, 3)

    # Ragged plane-axis blocks: nc = 7 with bc = 4 (cdiv grid, last block short).
    xr = jax.random.normal(k1, (1, 7, 16, 128), dtype=jnp.float32)
    out_r = jax.block_until_ready(
        projection_pooling(xr, horizontal=True, block_bytes=32 * 1024))
    assert jnp.allclose(out_r, ref(xr, True), atol=1e-5, rtol=1e-5)

    # Intra-plane tiling, horizontal: plane > budget, W tiled in 128-lane chunks
    # (last W block ragged).
    xh = jax.random.normal(k2, (1, 2, 64, 384), dtype=jnp.float32)
    out_h = jax.block_until_ready(
        projection_pooling(xh, horizontal=True, block_bytes=64 * 1024))
    assert jnp.allclose(out_h, ref(xh, True), atol=1e-5, rtol=1e-5)

    # Intra-plane tiling, vertical: plane > budget, H tiled in sublane chunks
    # (last H block ragged).
    xv = jax.random.normal(k3, (1, 2, 96, 256), dtype=jnp.float32)
    out_v = jax.block_until_ready(
        projection_pooling(xv, horizontal=False, block_bytes=64 * 1024))
    assert jnp.allclose(out_v, ref(xv, False), atol=1e-5, rtol=1e-5)

    print("KERNEL_OK")
</pallas_src>

<mosaic_0001>
module attributes {stable_mosaic.version = 11 : i64} {
  func.func @_pool_h_kernel(%arg0: i32, %arg1: memref<8x16x16xf32, #tpu.memory_space<vmem>>, %arg2: memref<8x16x16xf32, #tpu.memory_space<vmem>>) attributes {dimension_semantics = [#tpu.dimension_semantics<parallel>], iteration_bounds = array<i64: 1>, scalar_prefetch = 0 : i64, scratch_operands = 0 : i64, tpu.core_type = #tpu.core_type<tc>, window_params = [{transform_indices = @transform_0, window_bounds = array<i64: 8, 16, 16>}, {transform_indices = @transform_1, window_bounds = array<i64: 8, 16, 16>}]} {
    %c0 = arith.constant 0 : index
    %c0_0 = arith.constant 0 : index
    %c0_1 = arith.constant 0 : index
    %0 = vector.load %arg1[%c0, %c0_0, %c0_1] : memref<8x16x16xf32, #tpu.memory_space<vmem>>, vector<8x16x16xf32>
    %cst = arith.constant dense<0.000000e+00> : vector<8x16xf32>
    %1 = vector.multi_reduction <add>, %0, %cst [1] : vector<8x16x16xf32> to vector<8x16xf32>
    %2 = vector.shape_cast %1 : vector<8x16xf32> to vector<8x1x16xf32>
    %cst_2 = arith.constant 6.250000e-02 : f32
    %3 = vector.broadcast %cst_2 : f32 to vector<8x1x16xf32>
    %4 = arith.mulf %2, %3 : vector<8x1x16xf32>
    %5 = vector.shape_cast %4 : vector<8x1x16xf32> to vector<8x1x16xf32>
    %6 = vector.broadcast %5 : vector<8x1x16xf32> to vector<8x16x16xf32>
    %c0_3 = arith.constant 0 : index
    %c0_4 = arith.constant 0 : index
    %c0_5 = arith.constant 0 : index
    %7 = vector.load %arg2[%c0_3, %c0_4, %c0_5] : memref<8x16x16xf32, #tpu.memory_space<vmem>>, vector<8x16x16xf32>
    tpu.vector_store %arg2[%c0_3, %c0_4, %c0_5], %6 {strides = array<i32>} : memref<8x16x16xf32, #tpu.memory_space<vmem>>, vector<8x16x16xf32>,
    return
  }
  func.func @transform_0(%arg0: i32) -> (i32, i32, i32) {
    %c0_i32 = arith.constant 0 : i32
    %c0_i32_0 = arith.constant 0 : i32
    %c0_i32_1 = arith.constant 0 : i32
    return %arg0, %c0_i32, %c0_i32_0 : i32, i32, i32
  }
  func.func @transform_1(%arg0: i32) -> (i32, i32, i32) {
    %c0_i32 = arith.constant 0 : i32
    %c0_i32_0 = arith.constant 0 : i32
    %c0_i32_1 = arith.constant 0 : i32
    return %arg0, %c0_i32, %c0_i32_0 : i32, i32, i32
  }
}

</mosaic_0001>

<llo_original>
// kernel: tpu_custom_call.1
$region0: #{tpu_custom_call.1}
  #allocation0 [shape = 'u32[]', space=smem, size = 0x4, offset = 0x4, fixed_abs, tag = 'smem constant byte address 0x4 - core index']
  #allocation1 [shape = 'u32[72,128]{1,0:T(1,128)}', space=vmem, size = 0x9000, scoped, tag = 'internal scratch']
  %s0 = inlined_call_operand.hbm [shape: f32[8,16,16], index: 0, kind: input, shape index: {}]
  %s1 = inlined_call_operand.hbm [shape: f32[8,16,16], index: 1, kind: output, shape index: {}]
  %s2 = sld [smem:[#allocation0]]
  $region18: #{tpu_custom_call.1} parent=0
    _
  %s4 = ssub.s32 1, %s2
  %s5 = scalar_select 0, %s4, %s2
  $region1: #{tpu_custom_call.1} parent=0
    #allocation2 [shape = 'u8[65536]{0}', space=vmem, size = 0x10000, scoped, tag = 'input window, operand 0, single buffered']
    #allocation3 [shape = 's32[1]{0}', space=sflag, size = 0x4, scoped, tag = 'scoped memory for tpu_custom_call.1']
    #allocation4 [shape = 's32[1]{0}', space=sflag, size = 0x4, scoped, tag = 'scoped memory for tpu_custom_call.1']
    #allocation5 [shape = 'u8[65536]{0}', space=vmem, size = 0x10000, scoped, tag = 'output window, operand 0, single buffered']
    %6 = vsyncpa [#allocation3], 0
    %7 = vsyncpa [#allocation4], 0
    // Predicated region
    $region2: #{tpu_custom_call.1} parent=1 // pred_check
      _
    $region3: #{tpu_custom_call.1} parent=1 // pred_check_branch
      %9 = sbr.rel (0) target = $region5
    $region4: #{tpu_custom_call.1} parent=1 // pred_region
      %11 = vsyncadd [#allocation3], 0
      %s12 = sshll.u32 %s0, 4
      %s13 = int_to_ptr.hbm [resolvable:$true] %s12
      %s14 = sshll.u32 [#allocation2], 4
      %s15 = int_to_ptr.vmem [resolvable:$true] %s14
      %20 = dma.hbm_to_vmem [thread:$0]  %s13, 2048, %s15, [#allocation3], 128, 128, 8
    $region5: #{tpu_custom_call.1} parent=1 // pred_fallthru
      _
    // Predicated region
    $region6: #{tpu_custom_call.1} parent=1 // pred_check
      _
    $region7: #{tpu_custom_call.1} parent=1 // pred_check_branch
      %22 = sbr.rel (0) target = $region9
    $region8: #{tpu_custom_call.1} parent=1 // pred_region
      %24 = dma.done [#allocation3], 2048
    $region9: #{tpu_custom_call.1} parent=1 // pred_fallthru
      _
    %v25 = vld [vmem:[#allocation2] sm:$0xff]
    %v26 = vld [vmem:[#allocation2 + $0x8] sm:$0xff]
    %v27 = vld [vmem:[#allocation2 + $0x10] sm:$0xff]
    %v28 = vld [vmem:[#allocation2 + $0x18] sm:$0xff]
    %v29 = vld [vmem:[#allocation2 + $0x20] sm:$0xff]
    %v30 = vld [vmem:[#allocation2 + $0x28] sm:$0xff]
    %v31 = vld [vmem:[#allocation2 + $0x30] sm:$0xff]
    %v32 = vld [vmem:[#allocation2 + $0x38] sm:$0xff]
    %v33 = vld [vmem:[#allocation2 + $0x40] sm:$0xff]
    %v34 = vld [vmem:[#allocation2 + $0x48] sm:$0xff]
    %v35 = vld [vmem:[#allocation2 + $0x50] sm:$0xff]
    %v36 = vld [vmem:[#allocation2 + $0x58] sm:$0xff]
    %v37 = vld [vmem:[#allocation2 + $0x60] sm:$0xff]
    %v38 = vld [vmem:[#allocation2 + $0x68] sm:$0xff]
    %v39 = vld [vmem:[#allocation2 + $0x70] sm:$0xff]
    %v40 = vld [vmem:[#allocation2 + $0x78] sm:$0xff]
    %vm41 = vcmask 130048
    %v42 = vsel %vm41, %v25, 0.0
    %v43 = vsel %vm41, %v26, 0.0
    %v44 = vadd.f32 %v42, %v43
    %v45 = vrot.slane %v44, 4
    %v46 = vadd.f32 %v44, %v45
    %v47 = vrot.slane %v46, 2
    %v48 = vadd.f32 %v46, %v47
    %v49 = vrot.slane %v48, 1
    %v50 = vadd.f32 %v48, %v49
    %v51 = vsel %vm41, %v27, 0.0
    %v52 = vsel %vm41, %v28, 0.0
    %v53 = vadd.f32 %v51, %v52
    %v54 = vrot.slane %v53, 4
    %v55 = vadd.f32 %v53, %v54
    %v56 = vrot.slane %v55, 2
    %v57 = vadd.f32 %v55, %v56
    %v58 = vrot.slane %v57, 1
    %v59 = vadd.f32 %v57, %v58
    %v60 = vsel %vm41, %v29, 0.0
    %v61 = vsel %vm41, %v30, 0.0
    %v62 = vadd.f32 %v60, %v61
    %v63 = vrot.slane %v62, 4
    %v64 = vadd.f32 %v62, %v63
    %v65 = vrot.slane %v64, 2
    %v66 = vadd.f32 %v64, %v65
    %v67 = vrot.slane %v66, 1
    %v68 = vadd.f32 %v66, %v67
    %v69 = vsel %vm41, %v31, 0.0
    %v70 = vsel %vm41, %v32, 0.0
    %v71 = vadd.f32 %v69, %v70
    %v72 = vrot.slane %v71, 4
    %v73 = vadd.f32 %v71, %v72
    %v74 = vrot.slane %v73, 2
    %v75 = vadd.f32 %v73, %v74
    %v76 = vrot.slane %v75, 1
    %v77 = vadd.f32 %v75, %v76
    %v78 = vsel %vm41, %v33, 0.0
    %v79 = vsel %vm41, %v34, 0.0
    %v80 = vadd.f32 %v78, %v79
    %v81 = vrot.slane %v80, 4
    %v82 = vadd.f32 %v80, %v81
    %v83 = vrot.slane %v82, 2
    %v84 = vadd.f32 %v82, %v83
    %v85 = vrot.slane %v84, 1
    %v86 = vadd.f32 %v84, %v85
    %v87 = vsel %vm41, %v35, 0.0
    %v88 = vsel %vm41, %v36, 0.0
    %v89 = vadd.f32 %v87, %v88
    %v90 = vrot.slane %v89, 4
    %v91 = vadd.f32 %v89, %v90
    %v92 = vrot.slane %v91, 2
    %v93 = vadd.f32 %v91, %v92
    %v94 = vrot.slane %v93, 1
    %v95 = vadd.f32 %v93, %v94
    %v96 = vsel %vm41, %v37, 0.0
    %v97 = vsel %vm41, %v38, 0.0
    %v98 = vadd.f32 %v96, %v97
    %v99 = vrot.slane %v98, 4
    %v100 = vadd.f32 %v98, %v99
    %v101 = vrot.slane %v100, 2
    %v102 = vadd.f32 %v100, %v101
    %v103 = vrot.slane %v102, 1
    %v104 = vadd.f32 %v102, %v103
    %v105 = vsel %vm41, %v39, 0.0
    %v106 = vsel %vm41, %v40, 0.0
    %v107 = vadd.f32 %v105, %v106
    %v108 = vrot.slane %v107, 4
    %v109 = vadd.f32 %v107, %v108
    %v110 = vrot.slane %v109, 2
    %v111 = vadd.f32 %v109, %v110
    %v112 = vrot.slane %v111, 1
    %v113 = vadd.f32 %v111, %v112
    %v114 = vmul.f32 %v50, 0.0625
    %v115 = vmul.f32 %v59, 0.0625
    %v116 = vmul.f32 %v68, 0.0625
    %v117 = vmul.f32 %v77, 0.0625
    %v118 = vmul.f32 %v86, 0.0625
    %v119 = vmul.f32 %v95, 0.0625
    %v120 = vmul.f32 %v104, 0.0625
    %v121 = vmul.f32 %v113, 0.0625
    %122 = vst.msk [vmem:[#allocation5] sm:$0xff] %vm41, %v114
    %123 = vst.msk [vmem:[#allocation5 + $0x8] sm:$0xff] %vm41, %v114
    %124 = vst.msk [vmem:[#allocation5 + $0x10] sm:$0xff] %vm41, %v115
    %125 = vst.msk [vmem:[#allocation5 + $0x18] sm:$0xff] %vm41, %v115
    %126 = vst.msk [vmem:[#allocation5 + $0x20] sm:$0xff] %vm41, %v116
    %127 = vst.msk [vmem:[#allocation5 + $0x28] sm:$0xff] %vm41, %v116
    %128 = vst.msk [vmem:[#allocation5 + $0x30] sm:$0xff] %vm41, %v117
    %129 = vst.msk [vmem:[#allocation5 + $0x38] sm:$0xff] %vm41, %v117
    %130 = vst.msk [vmem:[#allocation5 + $0x40] sm:$0xff] %vm41, %v118
    %131 = vst.msk [vmem:[#allocation5 + $0x48] sm:$0xff] %vm41, %v118
    %132 = vst.msk [vmem:[#allocation5 + $0x50] sm:$0xff] %vm41, %v119
    %133 = vst.msk [vmem:[#allocation5 + $0x58] sm:$0xff] %vm41, %v119
    %134 = vst.msk [vmem:[#allocation5 + $0x60] sm:$0xff] %vm41, %v120
    %135 = vst.msk [vmem:[#allocation5 + $0x68] sm:$0xff] %vm41, %v120
    %136 = vst.msk [vmem:[#allocation5 + $0x70] sm:$0xff] %vm41, %v121
    %137 = vst.msk [vmem:[#allocation5 + $0x78] sm:$0xff] %vm41, %v121
    // Predicated region
    $region10: #{tpu_custom_call.1} parent=1 // pred_check
      _
    $region11: #{tpu_custom_call.1} parent=1 // pred_check_branch
      %139 = sbr.rel (0) target = $region13
    $region12: #{tpu_custom_call.1} parent=1 // pred_region
      %141 = vsyncadd [#allocation4], 0
      %s142 = sshll.u32 [#allocation5], 4
      %s143 = int_to_ptr.vmem [resolvable:$true] %s142
      %s144 = sshll.u32 %s1, 4
      %s145 = int_to_ptr.hbm [resolvable:$true] %s144
      %150 = dma.vmem_to_hbm [thread:$0]  %s143, 2048, %s145, [#allocation4], 128, 128, 8
    $region13: #{tpu_custom_call.1} parent=1 // pred_fallthru
      _
    // Predicated region
    $region14: #{tpu_custom_call.1} parent=1 // pred_check
      _
    $region15: #{tpu_custom_call.1} parent=1 // pred_check_branch
      %152 = sbr.rel (0) target = $region17
    $region16: #{tpu_custom_call.1} parent=1 // pred_region
      %154 = dma.done [#allocation4], 2048
    $region17: #{tpu_custom_call.1} parent=1 // pred_fallthru
      _
    %155 = vsyncpa [#allocation3], 1
    %156 = vsyncpa [#allocation4], 1

</llo_original>
